<compile_context>
chip_gen: v6e
topology: v6e:2x2x1
jax: 0.10.0
libtpu: 0.0.40
codegen_flags: <defaults>
</compile_context>

<pallas_src>
import functools

import jax
import jax.numpy as jnp
from jax.experimental import pallas as pl
from jax.experimental.pallas import tpu as pltpu


def _round_up(x, m):
    return (x + m - 1) // m * m


def pad_and_tile_sizes(n):
    """Node-axis padding + tile size: full (sublane-rounded) when small, 512 otherwise."""
    tile = 512 if n > 512 else _round_up(n, 16)
    n_pad = _round_up(n, tile)
    return n_pad, tile


# ---------------------------------------------------------------------------
# Kernel 1 (prologue): per-relation feature transform  xw[r] = x @ W[r]
# (tiny: R*N*Cin*Cp flops; output already lane-dense with Cp = round_up(Cout,128))
# ---------------------------------------------------------------------------
def xw_kernel(x_ref, w_ref, o_ref):
    o_ref[0] = jnp.dot(x_ref[...], w_ref[0], preferred_element_type=jnp.float32)


def compute_xw(x_pad, w_pad, *, tile_n):
    n_pad, c_in = x_pad.shape
    r, _, c_p = w_pad.shape
    return pl.pallas_call(
        xw_kernel,
        out_shape=jax.ShapeDtypeStruct((r, n_pad, c_p), jnp.float32),
        grid_spec=pltpu.PrefetchScalarGridSpec(
            num_scalar_prefetch=0,
            grid=(r, n_pad // tile_n),
            in_specs=[
                pl.BlockSpec((tile_n, c_in), lambda ri, ni: (ni, 0)),   # x tile
                pl.BlockSpec((1, c_in, c_p), lambda ri, ni: (ri, 0, 0)),  # W[r]
            ],
            out_specs=pl.BlockSpec((1, tile_n, c_p), lambda ri, ni: (ri, ni, 0)),
        ),
        compiler_params=pltpu.CompilerParams(
            dimension_semantics=("parallel", "parallel"),
            vmem_limit_bytes=48 * 1024 * 1024,
        ),
    )(x_pad, w_pad)


# ---------------------------------------------------------------------------
# Kernel 2 (main): out[i-tile] = relu( sum_{r,k} scale[r, i-tile] *
#                                      (cnt[r, i-tile, k-tile] @ xw[r, k-tile]) + b )
# grid = (src_tiles [parallel], relations [arbitrary], dst_tiles [arbitrary])
# The output block index ignores (r, k) -> it stays resident in VMEM and is
# used directly as the f32 accumulator (no scratch).
# ---------------------------------------------------------------------------
def rgcn_acc_kernel(adj_ref, scale_ref, xw_ref, b_ref, o_ref, *, apply_relu):
    r = pl.program_id(1)
    k = pl.program_id(2)

    @pl.when((r == 0) & (k == 0))
    def _():
        o_ref[...] = jnp.zeros_like(o_ref)

    # cnt tile (bf16, exact small integers) @ xw tile (f32), f32 accumulation.
    contrib = jnp.dot(adj_ref[0].astype(jnp.float32), xw_ref[0],
                      preferred_element_type=jnp.float32)
    o_ref[...] += scale_ref[0] * contrib          # row-normalisation 1/deg

    @pl.when((r == pl.num_programs(1) - 1) & (k == pl.num_programs(2) - 1))
    def _():
        out = o_ref[...] + b_ref[...]
        if apply_relu:
            out = jnp.maximum(out, 0.0)
        o_ref[...] = out


def rgcn_layer(adj_cnt, scale, x, w, b, *, n_nodes, apply_relu=True):
    """One RGCNConv layer (+ model-level ReLU) as two pallas_calls."""
    num_rel, n_pad, _ = adj_cnt.shape
    c_in = x.shape[1]
    c_out = w.shape[2]
    c_p = _round_up(c_out, 128)                   # lane-dense output width
    _, tile = pad_and_tile_sizes(n_pad)
    assert n_pad % tile == 0

    # Pad features / parameters to the tile- and lane-dense layout.
    x_pad = jnp.zeros((n_pad, c_in), jnp.float32).at[:x.shape[0], :].set(x)
    w_pad = jnp.zeros((num_rel, c_in, c_p), jnp.float32).at[:, :, :c_out].set(w)
    b_pad = jnp.zeros((1, c_p), jnp.float32).at[:, :c_out].set(b)

    xw = compute_xw(x_pad, w_pad, tile_n=tile)    # [R, Npad, Cp] f32

    kernel = functools.partial(rgcn_acc_kernel, apply_relu=apply_relu)
    out_pad = pl.pallas_call(
        kernel,
        out_shape=jax.ShapeDtypeStruct((n_pad, c_p), jnp.float32),
        grid_spec=pltpu.PrefetchScalarGridSpec(
            num_scalar_prefetch=0,
            grid=(n_pad // tile, num_rel, n_pad // tile),
            in_specs=[
                pl.BlockSpec((1, tile, tile), lambda i, r, k: (r, i, k)),  # cnt tile
                pl.BlockSpec((1, tile, 1), lambda i, r, k: (r, i, 0)),     # 1/deg rows
                pl.BlockSpec((1, tile, c_p), lambda i, r, k: (r, k, 0)),   # xw tile
                pl.BlockSpec((1, c_p), lambda i, r, k: (0, 0)),            # bias
            ],
            out_specs=pl.BlockSpec((tile, c_p), lambda i, r, k: (i, 0)),
        ),
        compiler_params=pltpu.CompilerParams(
            dimension_semantics=("parallel", "arbitrary", "arbitrary"),
            vmem_limit_bytes=48 * 1024 * 1024,
        ),
    )(adj_cnt, scale, xw, b_pad)

    return out_pad[:n_nodes, :c_out]


def build_adj_counts_and_scale(src, etype, dst, num_nodes_pad, num_edge_types):
    """Dense equivalent of stack_matrices + sum_sparse (vertical stacking).

    Returns bf16 edge-count adjacency [R, Npad, Npad] (exact small integers)
    and f32 row-normalisation 1/deg per (relation, src) as [R, Npad, 1]
    (0 where the row has no edges), so the big operand can live in bf16
    without any precision loss.
    """
    r, n_p = num_edge_types, num_nodes_pad
    cnt = jnp.zeros((r, n_p, n_p), jnp.float32)
    cnt = cnt.at[etype, src, dst].add(1.0)        # duplicates accumulate (matches sum_sparse)
    deg = cnt.sum(axis=-1)
    scale = jnp.where(deg > 0, 1.0 / jnp.maximum(deg, 1.0), 0.0)
    return cnt.astype(jnp.bfloat16), scale[..., None].astype(jnp.float32)


def init_rgcn_params(key, dims, num_edge_types):
    """Xavier-uniform (gain=sqrt(2), torch fan convention for 3D) weights, zero bias."""
    weights, biases = [], []
    keys = jax.random.split(key, len(dims) - 1)
    for l in range(len(dims) - 1):
        ci, co = dims[l], dims[l + 1]
        gain = 2.0 ** 0.5
        fan_in = ci * co                  # torch: size(1) * receptive_field
        fan_out = num_edge_types * co     # torch: size(0) * receptive_field
        bound = gain * (6.0 / (fan_in + fan_out)) ** 0.5
        w = jax.random.uniform(keys[l], (num_edge_types, ci, co),
                               jnp.float32, -bound, bound)
        weights.append(w)
        biases.append(jnp.zeros((1, co), jnp.float32))
    return weights, biases


def rgcn_forward(adj_cnt, scale, x, weights, biases, *, n_nodes):
    h = x
    for w, b in zip(weights, biases):
        # TODO(synk): F.dropout is identity in eval mode; training-mode dropout not implemented.
        h = rgcn_layer(adj_cnt, scale, h, w, b, n_nodes=n_nodes, apply_relu=True)
    return h


if __name__ == "__main__":
    key = jax.random.PRNGKey(0)
    N, R = 16, 3                 # nodes, edge types
    Cin, Chid, Cout = 8, 32, 16  # in / hidden / out channels
    num_layers = 2
    E = 40                       # edges

    k_src, k_dst, k_et, k_x, k_w = jax.random.split(key, 5)
    src = jax.random.randint(k_src, (E,), 0, N)
    dst = jax.random.randint(k_dst, (E,), 0, N)
    etype = jax.random.randint(k_et, (E,), 0, R)
    x = jax.random.normal(k_x, (N, Cin), jnp.float32)

    dims = [Cin] + [Chid] * (num_layers - 1) + [Cout]
    weights, biases = init_rgcn_params(k_w, dims, R)

    Npad, _ = pad_and_tile_sizes(N)
    adj_cnt, scale = build_adj_counts_and_scale(src, etype, dst, Npad, R)

    out = jax.block_until_ready(
        rgcn_forward(adj_cnt, scale, x, weights, biases, n_nodes=N))

    # pure-JAX reference for the same forward pass
    adj_full = (adj_cnt.astype(jnp.float32) * scale)[:, :N, :N]
    href = x
    for w, b in zip(weights, biases):
        af = jnp.einsum("rsd,dc->rsc", adj_full, href)
        href = jnp.maximum(jnp.einsum("rio,rni->no", w, af) + b, 0.0)
    assert out.shape == (N, Cout)
    assert jnp.allclose(out, href, atol=1e-4, rtol=1e-4), "kernel/reference mismatch"

    print("KERNEL_OK")
</pallas_src>

<mosaic_0001>
module attributes {stable_mosaic.version = 11 : i64} {
  func.func @xw_kernel(%arg0: i32, %arg1: i32, %arg2: memref<16x8xf32, #tpu.memory_space<vmem>>, %arg3: memref<1x8x128xf32, #tpu.memory_space<vmem>>, %arg4: memref<1x16x128xf32, #tpu.memory_space<vmem>>) attributes {dimension_semantics = [#tpu.dimension_semantics<parallel>, #tpu.dimension_semantics<parallel>], iteration_bounds = array<i64: 3, 1>, scalar_prefetch = 0 : i64, scratch_operands = 0 : i64, tpu.core_type = #tpu.core_type<tc>, window_params = [{transform_indices = @transform_0, window_bounds = array<i64: 16, 8>}, {transform_indices = @transform_1, window_bounds = array<i64: 1, 8, 128>}, {transform_indices = @transform_2, window_bounds = array<i64: 1, 16, 128>}]} {
    %c0 = arith.constant 0 : index
    %c0_0 = arith.constant 0 : index
    %0 = vector.load %arg2[%c0, %c0_0] : memref<16x8xf32, #tpu.memory_space<vmem>>, vector<16x8xf32>
    %c0_1 = arith.constant 0 : index
    %c0_2 = arith.constant 0 : index
    %c0_3 = arith.constant 0 : index
    %1 = vector.load %arg3[%c0_1, %c0_2, %c0_3] : memref<1x8x128xf32, #tpu.memory_space<vmem>>, vector<1x8x128xf32>
    %2 = vector.shape_cast %1 : vector<1x8x128xf32> to vector<8x128xf32>
    %cst = arith.constant dense<0.000000e+00> : vector<16x128xf32>
    %3 = tpu.matmul %0, %2, %cst {dimension_numbers = #tpu.dot_dimension_numbers<[1], [0], [0], [1], [0, 0, 1, 1], [], []>} : vector<16x8xf32>, vector<8x128xf32>, vector<16x128xf32> -> vector<16x128xf32>
    %c0_4 = arith.constant 0 : index
    %c0_5 = arith.constant 0 : index
    %c0_6 = arith.constant 0 : index
    %4 = vector.load %arg4[%c0_4, %c0_5, %c0_6] : memref<1x16x128xf32, #tpu.memory_space<vmem>>, vector<1x16x128xf32>
    %5 = vector.shape_cast %4 : vector<1x16x128xf32> to vector<16x128xf32>
    %6 = vector.shape_cast %3 : vector<16x128xf32> to vector<1x16x128xf32>
    tpu.vector_store %arg4[%c0_4, %c0_5, %c0_6], %6 {strides = array<i32>} : memref<1x16x128xf32, #tpu.memory_space<vmem>>, vector<1x16x128xf32>,
    return
  }
  func.func @transform_0(%arg0: i32, %arg1: i32) -> (i32, i32) {
    %c0_i32 = arith.constant 0 : i32
    %c0_i32_0 = arith.constant 0 : i32
    return %arg1, %c0_i32 : i32, i32
  }
  func.func @transform_1(%arg0: i32, %arg1: i32) -> (i32, i32, i32) {
    %c0_i32 = arith.constant 0 : i32
    %c0_i32_0 = arith.constant 0 : i32
    %c0_i32_1 = arith.constant 0 : i32
    return %arg0, %c0_i32, %c0_i32_0 : i32, i32, i32
  }
  func.func @transform_2(%arg0: i32, %arg1: i32) -> (i32, i32, i32) {
    %c0_i32 = arith.constant 0 : i32
    %c0_i32_0 = arith.constant 0 : i32
    return %arg0, %arg1, %c0_i32 : i32, i32, i32
  }
}

</mosaic_0001>

<llo_original>
// kernel: tpu_custom_call.1
$region0: #{tpu_custom_call.1}
  #allocation0 [shape = 'u32[]', space=smem, size = 0x4, offset = 0x4, fixed_abs, tag = 'smem constant byte address 0x4 - core index']
  #allocation1 [shape = 'u32[144,128]{1,0:T(1,128)}', space=vmem, size = 0x12000, scoped, tag = 'internal scratch']
  %s0 = inlined_call_operand.vmem [shape: f32[16,8], index: 0, kind: input, shape index: {}]
  %s1 = inlined_call_operand.vmem [shape: f32[3,8,128], index: 1, kind: input, shape index: {}]
  %s2 = inlined_call_operand.hbm [shape: f32[3,16,128], index: 2, kind: output, shape index: {}]
  %s3 = sld [smem:[#allocation0]]
  $region41: #{tpu_custom_call.1} parent=0
    _
  %s5 = ssub.s32 1, %s3
  %s6 = scalar_select 0, %s5, %s3
  $region1: #{tpu_custom_call.1} parent=0
    #allocation2 [shape = 'u8[16384]{0}', space=vmem, size = 0x4000, scoped, tag = 'output window, operand 0']
    #allocation3 [shape = 's32[2]{0}', space=sflag, size = 0x8, scoped, tag = 'scoped memory for tpu_custom_call.1']
    %7 = vsyncpa [#allocation3], 0
    %s8 = scalar_lea.sflag [#allocation3], 1
    %9 = vsyncpa %s8, 0
    loop: start=0, step=1, limit=5
    $region2: #{tpu_custom_call.1} parent=1 // loop_pre_header
      _
    $region3: #{tpu_custom_call.1} parent=1 // loop_header
      %s11 = sphi 0, %s15
      %p12 = scmp.ge.s32.totalorder %s11, 5
      %s18 = sphi 0, %s30
      %s19 = sphi 0, %s26
      %s20 = sphi 0, %s18
      %s21 = sphi 0, %s19
      %s22 = sphi 0, %s20
      %s23 = sphi 0, %s21
      %s33 = sphi 0, %s35
      %s36 = sphi 0, %s33
      %s37 = sphi 0, %s36
      %s53 = sphi 0, %s37
      %s59 = sphi 0, %s61
      %s62 = sphi 0, %s59
      %s63 = sphi 0, %s62
      %s79 = sphi 0, %s63
      %s87 = sphi 0, %s89
      %s90 = sphi 0, %s87
      %s91 = sphi 0, %s90
      %s107 = sphi 0, %s91
    $region4: #{tpu_custom_call.1} parent=1 // loop_header_branch
      %14 = sbr.rel (%p12) target = $region8
    $region5: #{tpu_custom_call.1} parent=1 // loop_body
      %s16 = ssub.s32 %s11, 1
      %s17 = ssub.s32 %s11, 2
      %s24 = sadd.s32 1, %s19
      %p25 = scmp.ge.s32.totalorder %s24, 1
      %s26 = scalar_select %p25, 0, %s24
      %s27 = sadd.s32 1, %s18
      %s28 = scalar_select %p25, %s27, %s18
      %p29 = scmp.ge.s32.totalorder %s28, 3
      %s30 = scalar_select %p29, 0, %s28
      %s31 = ssub.s32 %s19, %s26
      %p32 = scmp.eq.s32.totalorder %s31, 0
      %s34 = sadd.s32 %s33, 1
      %s35 = scalar_select %p32, %s33, %s34
      %p38 = pneg %p32
      %p39 = scmp.eq.s32.totalorder %s11, 2
      %p40 = por %p38, %p39
      %p41 = scmp.ne.s32.totalorder %s33, %s36
      %p42 = scmp.eq.s32.totalorder %s11, 0
      %p43 = por %p41, %p42
      %p44 = scmp.ne.s32.totalorder %s33, %s36
      %p45 = scmp.eq.s32.totalorder %s16, 2
      %p46 = por %p44, %p45
      %p47 = scmp.ne.s32.totalorder %s36, %s37
      %p48 = scmp.eq.s32.totalorder %s16, 0
      %p49 = por %p47, %p48
      %p50 = scmp.ne.s32.totalorder %s36, %s37
      %p51 = scmp.eq.s32.totalorder %s17, 2
      %p52 = por %p50, %p51
      %p54 = scmp.ne.s32.totalorder %s37, %s53
      %p55 = scmp.eq.s32.totalorder %s17, 0
      %p56 = por %p54, %p55
      %s57 = ssub.s32 %s18, %s30
      %p58 = scmp.eq.s32.totalorder %s57, 0
      %s60 = sadd.s32 %s59, 1
      %s61 = scalar_select %p58, %s59, %s60
      %p64 = pneg %p58
      %p65 = scmp.eq.s32.totalorder %s11, 2
      %p66 = por %p64, %p65
      %p67 = scmp.ne.s32.totalorder %s59, %s62
      %p68 = scmp.eq.s32.totalorder %s11, 0
      %p69 = por %p67, %p68
      %p70 = scmp.ne.s32.totalorder %s59, %s62
      %p71 = scmp.eq.s32.totalorder %s16, 2
      %p72 = por %p70, %p71
      %p73 = scmp.ne.s32.totalorder %s62, %s63
      %p74 = scmp.eq.s32.totalorder %s16, 0
      %p75 = por %p73, %p74
      %p76 = scmp.ne.s32.totalorder %s62, %s63
      %p77 = scmp.eq.s32.totalorder %s17, 2
      %p78 = por %p76, %p77
      %p80 = scmp.ne.s32.totalorder %s63, %s79
      %p81 = scmp.eq.s32.totalorder %s17, 0
      %p82 = por %p80, %p81
      %s83 = ssub.s32 %s18, %s30
      %s84 = ssub.s32 %s19, %s26
      %s85 = sor.u32 %s83, %s84
      %p86 = scmp.eq.s32.totalorder %s85, 0
      %s88 = sadd.s32 %s87, 1
      %s89 = scalar_select %p86, %s87, %s88
      %p92 = pneg %p86
      %p93 = scmp.eq.s32.totalorder %s11, 2
      %p94 = por %p92, %p93
      %p95 = scmp.ne.s32.totalorder %s87, %s90
      %p96 = scmp.eq.s32.totalorder %s11, 0
      %p97 = por %p95, %p96
      %p98 = scmp.ne.s32.totalorder %s87, %s90
      %p99 = scmp.eq.s32.totalorder %s16, 2
      %p100 = por %p98, %p99
      %p101 = scmp.ne.s32.totalorder %s90, %s91
      %p102 = scmp.eq.s32.totalorder %s16, 0
      %p103 = por %p101, %p102
      %p104 = scmp.ne.s32.totalorder %s90, %s91
      %p105 = scmp.eq.s32.totalorder %s17, 2
      %p106 = por %p104, %p105
      %p108 = scmp.ne.s32.totalorder %s91, %s107
      %p109 = scmp.eq.s32.totalorder %s17, 0
      %p110 = por %p108, %p109
      %p111 = scmp.le.s32.totalorder 1, %s11
      %p112 = scmp.lt.s32.totalorder %s11, 4
      %p113 = pnand %p111, %p112
      %p114 = pneg %p113
      // Predicated region
      $region9: #{tpu_custom_call.1} parent=5 // pred_check
        _
      $region10: #{tpu_custom_call.1} parent=5 // pred_check_branch
        %116 = sbr.rel (%p113) target = $region12
      $region11: #{tpu_custom_call.1} parent=5 // pred_region
        %s117 = ssub.s32 %s11, 1
        // Predicated region
        $region13: #{tpu_custom_call.1} parent=11 // pred_check
          %p118 = pneg %p49
        $region14: #{tpu_custom_call.1} parent=11 // pred_check_branch
          %120 = sbr.rel (%p118) target = $region16
        $region15: #{tpu_custom_call.1} parent=11 // pred_region
          %s121 = smul.u32 2, %s21
          %p122 = scmp.lt.s32.totalorder %s121, 1
          %s123 = scalar_select %p122, %s121, 1
          %s124 = smul.addr %s123, 8
          %s125 = scalar_lea.vmem %s0, %s124
          %s126 = smul.u32 2, %s21
        $region16: #{tpu_custom_call.1} parent=11 // pred_fallthru
          _
      $region12: #{tpu_custom_call.1} parent=5 // pred_fallthru
        _
      %p127 = scmp.lt.s32.totalorder %s11, 3
      // Predicated region
      $region17: #{tpu_custom_call.1} parent=5 // pred_check
        %p128 = pneg %p127
      $region18: #{tpu_custom_call.1} parent=5 // pred_check_branch
        %130 = sbr.rel (%p128) target = $region20
      $region19: #{tpu_custom_call.1} parent=5 // pred_region
        // Predicated region
        $region21: #{tpu_custom_call.1} parent=19 // pred_check
          %p131 = pneg %p69
        $region22: #{tpu_custom_call.1} parent=19 // pred_check_branch
          %133 = sbr.rel (%p131) target = $region24
        $region23: #{tpu_custom_call.1} parent=19 // pred_region
          %p134 = scmp.lt.s32.totalorder %s18, 2
          %s135 = scalar_select %p134, %s18, 2
          %s136 = smul.addr %s135, 8
          %s137 = scalar_lea.vmem %s1, %s136
        $region24: #{tpu_custom_call.1} parent=19 // pred_fallthru
          _
      $region20: #{tpu_custom_call.1} parent=5 // pred_fallthru
        _
      %p138 = scmp.le.s32.totalorder 1, %s11
      %p139 = scmp.lt.s32.totalorder %s11, 4
      %p140 = pnand %p138, %p139
      %p141 = pneg %p140
      // Predicated region
      $region25: #{tpu_custom_call.1} parent=5 // pred_check
        _
      $region26: #{tpu_custom_call.1} parent=5 // pred_check_branch
        %143 = sbr.rel (%p140) target = $region28
      $region27: #{tpu_custom_call.1} parent=5 // pred_region
        %s144 = ssub.s32 %s11, 1
        %s145 = smul.u32 2, %s21
        %p146 = scmp.lt.s32.totalorder %s145, 1
        %s147 = scalar_select %p146, %s145, 1
        %s148 = smul.addr %s147, 8
        %s149 = scalar_lea.vmem %s0, %s148
        %p150 = pneg %p49
        %p151 = pneg %p46
        %p152 = scmp.lt.s32.totalorder %s20, 2
        %s153 = scalar_select %p152, %s20, 2
        %s154 = smul.addr %s153, 8
        %s155 = scalar_lea.vmem %s1, %s154
        %p156 = pneg %p75
        %p157 = pneg %p72
        %p158 = pneg %p103
        %p159 = pneg %p100
        %s160 = sand.u32 %s90, 1
        %s161 = scalar_lea.sflag [#allocation3], %s160
        %s162 = sand.u32 %s90, 1
        %s163 = smul.addr %s162, 16
        %s164 = scalar_lea.vmem [#allocation2], %s163
        %s165 = smul.u32 2, %s21
        %p166 = scmp.lt.s32.totalorder %s165, 1
        %s167 = scalar_select %p166, %s165, 1
        %s168 = smul.addr %s167, 8
        %s169 = scalar_lea.vmem %s0, %s168
        %s170 = smul.u32 2, %s21
        %p171 = scmp.lt.s32.totalorder %s20, 2
        %s172 = scalar_select %p171, %s20, 2
        %s173 = smul.addr %s172, 8
        %s174 = scalar_lea.vmem %s1, %s173
        %s175 = smul.u32 2, %s21
        %v176 = vld [vmem:[%s169] sm:$0xff]
        %v177 = vld [vmem:[%s169 + $0x8] sm:$0xff]
        %v178 = vld [vmem:[%s174] sm:$0xff]
        %vm179 = vcmask 64512
        %v181 = vsel %vm179, %v176, 0
        %v184 = vsel %vm179, %v177, 0
        %186 = vmatprep.subr.mxu0 0.0
        %187 = vmatpush1.msra.mxu0 0.0
        %188 = vmatprep.subr.mxu0 0.0
        %189 = vmatpush1.msra.mxu0 0.0
        %190 = vmatprep.subr.mxu0 0.0
        %191 = vmatpush1.msra.mxu0 0.0
        %192 = vmatprep.subr.mxu0 0.0
        %193 = vmatpush1.msra.mxu0 0.0
        %194 = vmatprep.subr.mxu0 0.0
        %195 = vmatpush1.msra.mxu0 0.0
        %196 = vmatprep.subr.mxu0 0.0
        %197 = vmatpush1.msra.mxu0 0.0
        %198 = vmatprep.subr.mxu0 0.0
        %199 = vmatpush1.msra.mxu0 0.0
        %200 = vmatprep.subr.mxu0 0.0
        %201 = vmatpush1.msra.mxu0 0.0
        %202 = vmatprep.subr.mxu0 0.0
        %203 = vmatpush1.msra.mxu0 0.0
        %204 = vmatprep.subr.mxu0 0.0
        %205 = vmatpush1.msra.mxu0 0.0
        %206 = vmatprep.subr.mxu0 0.0
        %207 = vmatpush1.msra.mxu0 0.0
        %208 = vmatprep.subr.mxu0 0.0
        %209 = vmatpush1.msra.mxu0 0.0
        %210 = vmatprep.subr.mxu0 0.0
        %211 = vmatpush1.msra.mxu0 0.0
        %212 = vmatprep.subr.mxu0 0.0
        %213 = vmatpush1.msra.mxu0 0.0
        %214 = vmatprep.subr.mxu0 0.0
        %215 = vmatpush1.msra.mxu0 0.0
        %216 = vmatprep.subr.mxu0 0.0
        %217 = vmatpush1.msra.mxu0 %v178
        %218 = vmatprep.subr.mxu0 0.0
        %219 = vmatpush2.msra.mxu0 0.0
        %220 = vmatprep.subr.mxu0 0.0
        %221 = vmatpush2.msra.mxu0 0.0
        %222 = vmatprep.subr.mxu0 0.0
        %223 = vmatpush2.msra.mxu0 0.0
        %224 = vmatprep.subr.mxu0 0.0
        %225 = vmatpush2.msra.mxu0 0.0
        %226 = vmatprep.subr.mxu0 0.0
        %227 = vmatpush2.msra.mxu0 0.0
        %228 = vmatprep.subr.mxu0 0.0
        %229 = vmatpush2.msra.mxu0 0.0
        %230 = vmatprep.subr.mxu0 0.0
        %231 = vmatpush2.msra.mxu0 0.0
        %232 = vmatprep.subr.mxu0 0.0
        %233 = vmatpush2.msra.mxu0 0.0
        %234 = vmatprep.subr.mxu0 0.0
        %235 = vmatpush2.msra.mxu0 0.0
        %236 = vmatprep.subr.mxu0 0.0
        %237 = vmatpush2.msra.mxu0 0.0
        %238 = vmatprep.subr.mxu0 0.0
        %239 = vmatpush2.msra.mxu0 0.0
        %240 = vmatprep.subr.mxu0 0.0
        %241 = vmatpush2.msra.mxu0 0.0
        %242 = vmatprep.subr.mxu0 0.0
        %243 = vmatpush2.msra.mxu0 0.0
        %244 = vmatprep.subr.mxu0 0.0
        %245 = vmatpush2.msra.mxu0 0.0
        %246 = vmatprep.subr.mxu0 0.0
        %247 = vmatpush2.msra.mxu0 0.0
        %248 = vmatprep.subr.mxu0 0.0
        %249 = vmatpush2.msra.mxu0 0.0
        %250 = vmatprep.mubr.f32.mxu0 0.0
        %251 = vmatmul.mubr.f32.gmra.mxu0 %v181
        %v252 = vpop.f32.mrf.mxu0
        %v253 = vadd.f32 0.0, %v252
        %v254 = vpop.f32.mrf.mxu0
        %255 = vmatprep.mubr.f32.mxu0 0.0
        %256 = vmatmul.mubr.f32.gmra.mxu0 %v184
        %v257 = vpop.f32.mrf.mxu0
        %v258 = vadd.f32 0.0, %v257
        %v259 = vpop.f32.mrf.mxu0
        %260 = vdwg.mxu0
        %261 = vst [vmem:[%s164] sm:$0xff] %v253
        %262 = vst [vmem:[%s164 + $0x8] sm:$0xff] %v258
        %s263 = sand.u32 %s90, 1
        %s264 = scalar_lea.sflag [#allocation3], %s263
        %s265 = sand.u32 %s90, 1
        %s266 = smul.addr %s265, 16
        %s267 = scalar_lea.vmem [#allocation2], %s266
        // Predicated region
        $region29: #{tpu_custom_call.1} parent=27 // pred_check
          %p268 = pneg %p100
        $region30: #{tpu_custom_call.1} parent=27 // pred_check_branch
          %270 = sbr.rel (%p268) target = $region32
        $region31: #{tpu_custom_call.1} parent=27 // pred_region
          %s271 = smul.u32 2, %s21
          %s273 = ssub.s32 256, 256
          %274 = vsyncadd %s264, %s273
          %s275 = smul.addr %s20, 2
          %s276 = sadd.s32 %s271, %s275
          %s277 = smul.addr %s276, 128
          %s278 = scalar_lea.hbm %s2, %s277
          %s279 = sshll.u32 %s267, 4
          %s280 = int_to_ptr.vmem [resolvable:$true] %s279
          %285 = dma.vmem_to_hbm [thread:$0]  %s280, 256, %s278, %s264, 128, 128, 8
        $region32: #{tpu_custom_call.1} parent=27 // pred_fallthru
          _
      $region28: #{tpu_custom_call.1} parent=5 // pred_fallthru
        _
      %p286 = scmp.le.s32.totalorder 2, %s11
      // Predicated region
      $region33: #{tpu_custom_call.1} parent=5 // pred_check
        %p287 = pneg %p286
      $region34: #{tpu_custom_call.1} parent=5 // pred_check_branch
        %289 = sbr.rel (%p287) target = $region36
      $region35: #{tpu_custom_call.1} parent=5 // pred_region
        %s290 = ssub.s32 %s11, 2
        // Predicated region
        $region37: #{tpu_custom_call.1} parent=35 // pred_check
          %p291 = pneg %p106
        $region38: #{tpu_custom_call.1} parent=35 // pred_check_branch
          %293 = sbr.rel (%p291) target = $region40
        $region39: #{tpu_custom_call.1} parent=35 // pred_region
          %s294 = sand.u32 %s91, 1
          %s295 = scalar_lea.sflag [#allocation3], %s294
          %s296 = sand.u32 %s91, 1
          %s297 = smul.addr %s296, 16
          %s298 = scalar_lea.vmem [#allocation2], %s297
          %299 = dma.done %s295, 256
        $region40: #{tpu_custom_call.1} parent=35 // pred_fallthru
          _
      $region36: #{tpu_custom_call.1} parent=5 // pred_fallthru
        _
    $region6: #{tpu_custom_call.1} parent=1 // loop_footer
      %s15 = sadd.s32 1, %s11
    $region7: #{tpu_custom_call.1} parent=1 // loop_footer_branch
      %10 = sbr.rel target = $region3
    $region8: #{tpu_custom_call.1} parent=1 // loop_exit
      _
    %300 = vsyncpa [#allocation3], 1
    %s301 = scalar_lea.sflag [#allocation3], 1
    %302 = vsyncpa %s301, 1

</llo_original>
